<compile_context>
chip_gen: v5e
topology: v5e:2x2
jax: 0.10.0
libtpu: 0.0.40
codegen_flags: <defaults>
</compile_context>

<pallas_src>
import functools

import jax
import jax.numpy as jnp
from jax.experimental import pallas as pl
from jax.experimental.pallas import tpu as pltpu


_MASK_VALUE = -9.0e15  # matches the reference's -9e15 "no edge" constant


def _vmem_limit_bytes():
    """Raise the scoped VMEM limit toward the chip's capacity (conservatively)."""
    try:
        cap = pltpu.get_tpu_info().vmem_capacity_bytes
        if cap and cap > 0:
            return min(int(cap) * 3 // 4, 100 * 1024 * 1024)
    except Exception:
        pass
    return None


def _pick_block_rows(N, H, nheads):
    """Per-generation query-row tile: smaller on 64 MiB-VMEM chips (v7x)."""
    try:
        cap = int(pltpu.get_tpu_info().vmem_capacity_bytes)
    except Exception:
        cap = 64 * 1024 * 1024  # conservative default
    small_vmem = cap <= 64 * 1024 * 1024
    candidates = (256, 128, 64, 32) if small_vmem else (512, 256, 128, 64, 32)
    budget = cap // 2
    # Resident, grid-invariant slabs: Wh (bf16) + s2 (f32), worst-case 2x buffered.
    fixed = 2 * N * H * 2 + 2 * nheads * N * 4
    for tr in candidates:  # all multiples of 32 (int8 sublane tiling)
        # ~5 live [tr, N] f32 temporaries + int8 adj (2x) + small row-tiled arrays.
        need = fixed + tr * N * 24 + 2 * tr * (H + nheads) * 4
        if need <= budget:
            return tr
    return 32


# ---------------------------------------------------------------------------
# Kernel 1: projection + attention scores (runs once per layer, all heads).
# ---------------------------------------------------------------------------
def _project_kernel(x_ref, w_ref, b_ref, a1_ref, a2_ref, ab_ref,
                    wh_ref, s1_ref, s2_ref):
    """Wh = x @ W + b (heads stacked) and the per-head attention scores.

    x_ref  : [N, Fin]    f32
    w_ref  : [Fin, H]    f32    H = nheads * fout (head weights stacked)
    b_ref  : [1, H]      f32
    a1_ref : [H, nheads] f32    block-diagonal query-side attention vectors
    a2_ref : [H, nheads] f32    block-diagonal key-side attention vectors
    ab_ref : [1, nheads] f32    attention biases (folded into s1)
    wh_ref : [N, H]      bf16   value matrix for the attention kernel
    s1_ref : [N, nheads] f32    s1[i, h] = a1_h . Wh_h[i] + ab_h
    s2_ref : [N, nheads] f32    s2[j, h] = a2_h . Wh_h[j]
    """
    wh = jnp.dot(x_ref[...], w_ref[...],
                 preferred_element_type=jnp.float32) + b_ref[...]
    wh_ref[...] = wh.astype(wh_ref.dtype)
    s1_ref[...] = (jnp.dot(wh, a1_ref[...], preferred_element_type=jnp.float32)
                   + ab_ref[...])
    s2_ref[...] = jnp.dot(wh, a2_ref[...], preferred_element_type=jnp.float32)


def gat_project(x, W, b, A1, A2, ab):
    N, Fin = x.shape
    H = W.shape[1]
    nheads = A1.shape[1]
    return pl.pallas_call(
        _project_kernel,
        out_shape=(jax.ShapeDtypeStruct((N, H), jnp.bfloat16),
                   jax.ShapeDtypeStruct((N, nheads), jnp.float32),
                   jax.ShapeDtypeStruct((N, nheads), jnp.float32)),
        grid=(1,),
        in_specs=[
            pl.BlockSpec((N, Fin), lambda i: (0, 0)),
            pl.BlockSpec((Fin, H), lambda i: (0, 0)),
            pl.BlockSpec((1, H), lambda i: (0, 0)),
            pl.BlockSpec((H, nheads), lambda i: (0, 0)),
            pl.BlockSpec((H, nheads), lambda i: (0, 0)),
            pl.BlockSpec((1, nheads), lambda i: (0, 0)),
        ],
        out_specs=(
            pl.BlockSpec((N, H), lambda i: (0, 0)),
            pl.BlockSpec((N, nheads), lambda i: (0, 0)),
            pl.BlockSpec((N, nheads), lambda i: (0, 0)),
        ),
        compiler_params=pltpu.CompilerParams(
            dimension_semantics=("arbitrary",),
            vmem_limit_bytes=_vmem_limit_bytes()),
    )(x, W, b, A1, A2, ab)


# ---------------------------------------------------------------------------
# Kernel 2: masked multi-head attention + aggregation, row-tiled over queries.
# ---------------------------------------------------------------------------
def _gat_attention_kernel(s1_ref, adj_ref, wh_ref, s2_ref, out_ref, *,
                          nheads, fout, alpha, concat, final):
    """One query-row block of the fused multi-head GraphAttentionLayer.

    s1_ref : [TR, nheads] f32   query-side scores (attention bias folded in)
    adj_ref: [TR, N] int8       adjacency-mask rows (!=0 <=> edge i->j)
    wh_ref : [N, H] bf16        projected features of all nodes (values)
    s2_ref : [nheads, N] f32    key-side scores, lane-dense (no per-head transpose)
    out_ref: [TR, H] f32
    """
    # Additive mask bias, computed once and shared across all heads.
    bias = jnp.where(adj_ref[...] != 0,
                     jnp.float32(0.0), jnp.float32(_MASK_VALUE))   # [TR, N]

    for h in range(nheads):
        # e[i, j] = leakyrelu(s1[i, h] + s2[h, j]); LeakyReLU as max(e, alpha*e).
        e = s1_ref[:, h:h + 1] + s2_ref[h:h + 1, :]                 # [TR, N]
        e = jnp.maximum(e, alpha * e)
        masked = e + bias            # -9e15 absorbs e off-edge (f32 rounding)

        # Row softmax over neighbours; normalisation applied after the matmul.
        m = jnp.max(masked, axis=1, keepdims=True)
        p = jnp.exp(masked - m)
        l = jnp.sum(p, axis=1, keepdims=True)

        # h'_h = softmax(e_h) @ Wh_h  -- bf16 MXU operands, f32 accumulation.
        hp = jnp.dot(p.astype(wh_ref.dtype),
                     wh_ref[:, h * fout:(h + 1) * fout],
                     preferred_element_type=jnp.float32)            # [TR, fout]
        hp = hp * (1.0 / l)                                          # exact

        if final:
            # GAT.forward epilogue: elu(out_att(x)) followed by log_softmax(dim=1).
            o = jnp.where(hp > 0, hp, jnp.exp(jnp.minimum(hp, 0.0)) - 1.0)
            mm = jnp.max(o, axis=1, keepdims=True)
            sh = o - mm
            out_ref[...] = sh - jnp.log(jnp.sum(jnp.exp(sh), axis=1,
                                                keepdims=True))
        elif concat:
            # ELU inside the head (concat=True); clamp the exp argument.
            out_ref[:, h * fout:(h + 1) * fout] = jnp.where(
                hp > 0, hp, jnp.exp(jnp.minimum(hp, 0.0)) - 1.0)
        else:
            out_ref[:, h * fout:(h + 1) * fout] = hp


def gat_attention(s1, adj_mask, wh, s2_t, *, nheads, fout, alpha, concat,
                  final, block_rows=None):
    N, H = wh.shape
    assert H == nheads * fout
    assert (not final) or nheads == 1
    if block_rows is None:
        block_rows = _pick_block_rows(N, H, nheads)

    if N <= block_rows:
        tr, Np = N, N
    else:
        tr = block_rows
        Np = pl.cdiv(N, tr) * tr
        if Np != N:
            # Pad the query-row axis to a tile multiple; padded rows are fully
            # masked (all-zero adjacency) and sliced off again below.
            s1 = jnp.pad(s1, ((0, Np - N), (0, 0)))
            adj_mask = jnp.pad(adj_mask, ((0, Np - N), (0, 0)))

    grid = (Np // tr,)
    kernel = functools.partial(_gat_attention_kernel, nheads=nheads, fout=fout,
                               alpha=alpha, concat=concat, final=final)

    def run(single_buffer_invariants):
        def inv_spec(shape):
            if single_buffer_invariants:
                # Grid-invariant inputs: double-buffering them wastes VMEM.
                return pl.BlockSpec(shape, lambda i: (0, 0),
                                    pipeline_mode=pl.Buffered(1))
            return pl.BlockSpec(shape, lambda i: (0, 0))

        return pl.pallas_call(
            kernel,
            out_shape=jax.ShapeDtypeStruct((Np, H), jnp.float32),
            grid=grid,
            in_specs=[
                pl.BlockSpec((tr, nheads), lambda i: (i, 0)),   # s1 row block
                pl.BlockSpec((tr, N), lambda i: (i, 0)),        # adjacency rows
                inv_spec((N, H)),                               # Wh (bf16) values
                inv_spec((nheads, N)),                          # key-side scores
            ],
            out_specs=pl.BlockSpec((tr, H), lambda i: (i, 0)),
            compiler_params=pltpu.CompilerParams(
                dimension_semantics=("parallel",),
                vmem_limit_bytes=_vmem_limit_bytes()),
        )(s1, adj_mask, wh, s2_t)

    try:
        out = run(True)
    except Exception:
        # Runtime without single-buffering support: fall back to defaults.
        out = run(False)
    return out if Np == N else out[:N]


def gat_layer_fused(x, adj_mask, W, b, A1, A2, ab, *, nheads, fout, alpha,
                    concat, final, block_rows=None):
    """One multi-head GAT layer: projection kernel + row-tiled attention kernel."""
    wh, s1, s2 = gat_project(x, W, b, A1, A2, ab)
    # Single hoisted transpose ([N, nheads] -> [nheads, N]); replaces the old
    # per-head sublane->lane transposes inside the hot kernel.
    s2_t = jnp.transpose(s2)
    return gat_attention(s1, adj_mask, wh, s2_t, nheads=nheads, fout=fout,
                         alpha=alpha, concat=concat, final=final,
                         block_rows=block_rows)


# ---------------------------------------------------------------------------
# Parameter handling / glue.
# ---------------------------------------------------------------------------
def init_layer_params(key, in_features, out_features):
    """Deterministic params for one GraphAttentionLayer (torch Linear init)."""
    k1, k2, k3, k4 = jax.random.split(key, 4)
    lim_l = 1.0 / jnp.sqrt(in_features)
    W = jax.random.uniform(k1, (in_features, out_features), jnp.float32,
                           -lim_l, lim_l)
    b = jax.random.uniform(k2, (1, out_features), jnp.float32, -lim_l, lim_l)
    lim_a = 1.0 / jnp.sqrt(2 * out_features)
    a_full = jax.random.uniform(k3, (2 * out_features, 1), jnp.float32,
                                -lim_a, lim_a)
    a1 = a_full[:out_features]
    a2 = a_full[out_features:]
    ab = jax.random.uniform(k4, (1, 1), jnp.float32, -lim_a, lim_a)
    return dict(W=W, b=b, a1=a1, a2=a2, ab=ab)


def pack_head_params(head_params):
    """Stack per-head params so all heads run inside one kernel pair."""
    nheads = len(head_params)
    fout = head_params[0]["W"].shape[1]
    H = nheads * fout
    W = jnp.concatenate([p["W"] for p in head_params], axis=1)     # [Fin, H]
    b = jnp.concatenate([p["b"] for p in head_params], axis=1)     # [1, H]
    A1 = jnp.zeros((H, nheads), jnp.float32)                       # block-diag
    A2 = jnp.zeros((H, nheads), jnp.float32)
    for h, p in enumerate(head_params):
        A1 = A1.at[h * fout:(h + 1) * fout, h].set(p["a1"][:, 0])
        A2 = A2.at[h * fout:(h + 1) * fout, h].set(p["a2"][:, 0])
    ab = jnp.concatenate([p["ab"] for p in head_params], axis=1)   # [1, nheads]
    return W, b, A1, A2, ab


def gat_forward(x, adj_mask, head_params, out_params, *, alpha):
    """Full GAT.forward (eval mode: all dropouts are identity)."""
    nheads = len(head_params)
    nhid = head_params[0]["W"].shape[1]
    nclass = out_params["W"].shape[1]

    # x = dropout(x) -> identity in eval mode.
    Wh, bh, A1h, A2h, abh = pack_head_params(head_params)
    hidden = gat_layer_fused(x, adj_mask, Wh, bh, A1h, A2h, abh,
                             nheads=nheads, fout=nhid, alpha=alpha,
                             concat=True, final=False)
    # x = dropout(x) -> identity in eval mode.
    Wo, bo, A1o, A2o, abo = pack_head_params([out_params])
    out = gat_layer_fused(hidden, adj_mask, Wo, bo, A1o, A2o, abo,
                          nheads=1, fout=nclass, alpha=alpha,
                          concat=False, final=True)
    return out  # log_softmax(elu(h_prime), dim=1)


def edge_index_to_adj_mask(edge_index, num_nodes):
    """Plain-JAX equivalent of (to_dense_adj(edge_index).squeeze(0) > 0)."""
    adj = jnp.zeros((num_nodes, num_nodes), jnp.float32)
    adj = adj.at[edge_index[0], edge_index[1]].add(1.0)
    return (adj > 0).astype(jnp.int8)


def gat_reference(x, adj_mask, head_params, out_params, *, alpha):
    """Plain-JAX (non-Pallas) reference of the torch GAT forward, eval mode."""
    hi = jax.lax.Precision.HIGHEST
    edge = adj_mask != 0

    def layer(h, p, concat):
        Wh = jnp.dot(h, p["W"], precision=hi) + p["b"]
        e = (jnp.dot(Wh, p["a1"], precision=hi)
             + jnp.dot(Wh, p["a2"], precision=hi).T
             + p["ab"][0, 0])
        e = jnp.where(e > 0, e, alpha * e)
        masked = jnp.where(edge, e, _MASK_VALUE)
        att = jax.nn.softmax(masked, axis=1)
        hp = jnp.dot(att, Wh, precision=hi)
        return jax.nn.elu(hp) if concat else hp

    hidden = jnp.concatenate([layer(x, p, True) for p in head_params], axis=1)
    out = layer(hidden, out_params, False)
    return jax.nn.log_softmax(jax.nn.elu(out), axis=1)


if __name__ == "__main__":
    # Small, deterministic problem: N=8 nodes, nfeat=16, nhid=8, nclass=4, 4 heads.
    N, nfeat, nhid, nclass, nheads = 8, 16, 8, 4, 4
    alpha = 0.2

    key = jax.random.PRNGKey(0)
    kx, kp = jax.random.split(key)

    # Node features [N, nfeat]
    x = jax.random.normal(kx, (N, nfeat), jnp.float32)

    # Deterministic edge_index [2, E]: ring graph (both directions) + self loops.
    src = jnp.concatenate([jnp.arange(N), jnp.arange(N), jnp.arange(N)])
    dst = jnp.concatenate([(jnp.arange(N) + 1) % N,
                           (jnp.arange(N) - 1) % N,
                           jnp.arange(N)])
    edge_index = jnp.stack([src, dst]).astype(jnp.int32)
    adj_mask = edge_index_to_adj_mask(edge_index, N)

    # Parameters: nheads attention heads (nfeat -> nhid) + output layer
    # (nhid*nheads -> nclass).
    pkeys = jax.random.split(kp, nheads + 1)
    head_params = [init_layer_params(pkeys[i], nfeat, nhid)
                   for i in range(nheads)]
    out_params = init_layer_params(pkeys[nheads], nhid * nheads, nclass)

    out = gat_forward(x, adj_mask, head_params, out_params, alpha=alpha)
    out = jax.block_until_ready(out)

    assert out.shape == (N, nclass)
    # log_softmax rows should sum (in prob space) to ~1.
    assert bool(jnp.all(jnp.abs(jnp.sum(jnp.exp(out), axis=1) - 1.0) < 1e-4))

    # Numerical parity with a plain-JAX reference of the torch module.
    # Scores / softmax are exact f32; the tolerance covers the bf16 value path.
    ref = gat_reference(x, adj_mask, head_params, out_params, alpha=alpha)
    assert bool(jnp.allclose(out, ref, atol=2e-2, rtol=2e-2))

    print("KERNEL_OK")
</pallas_src>

<mosaic_0001>
module attributes {stable_mosaic.version = 11 : i64} {
  func.func @_project_kernel(%arg0: i32, %arg1: memref<8x16xf32, #tpu.memory_space<vmem>>, %arg2: memref<16x32xf32, #tpu.memory_space<vmem>>, %arg3: memref<1x32xf32, #tpu.memory_space<vmem>>, %arg4: memref<32x4xf32, #tpu.memory_space<vmem>>, %arg5: memref<32x4xf32, #tpu.memory_space<vmem>>, %arg6: memref<1x4xf32, #tpu.memory_space<vmem>>, %arg7: memref<8x32xbf16, #tpu.memory_space<vmem>>, %arg8: memref<8x4xf32, #tpu.memory_space<vmem>>, %arg9: memref<8x4xf32, #tpu.memory_space<vmem>>) attributes {dimension_semantics = [#tpu.dimension_semantics<arbitrary>], iteration_bounds = array<i64: 1>, scalar_prefetch = 0 : i64, scratch_operands = 0 : i64, tpu.core_type = #tpu.core_type<tc>, window_params = [{pipeline_mode = #tpu.pipeline_mode<synchronous>, transform_indices = @transform_0, window_bounds = array<i64: 8, 16>}, {pipeline_mode = #tpu.pipeline_mode<synchronous>, transform_indices = @transform_1, window_bounds = array<i64: 16, 32>}, {pipeline_mode = #tpu.pipeline_mode<synchronous>, transform_indices = @transform_2, window_bounds = array<i64: 1, 32>}, {pipeline_mode = #tpu.pipeline_mode<synchronous>, transform_indices = @transform_3, window_bounds = array<i64: 32, 4>}, {pipeline_mode = #tpu.pipeline_mode<synchronous>, transform_indices = @transform_4, window_bounds = array<i64: 32, 4>}, {pipeline_mode = #tpu.pipeline_mode<synchronous>, transform_indices = @transform_5, window_bounds = array<i64: 1, 4>}, {pipeline_mode = #tpu.pipeline_mode<synchronous>, transform_indices = @transform_6, window_bounds = array<i64: 8, 32>}, {pipeline_mode = #tpu.pipeline_mode<synchronous>, transform_indices = @transform_7, window_bounds = array<i64: 8, 4>}, {pipeline_mode = #tpu.pipeline_mode<synchronous>, transform_indices = @transform_8, window_bounds = array<i64: 8, 4>}]} {
    %c0 = arith.constant 0 : index
    %c0_0 = arith.constant 0 : index
    %0 = vector.load %arg1[%c0, %c0_0] : memref<8x16xf32, #tpu.memory_space<vmem>>, vector<8x16xf32>
    %c0_1 = arith.constant 0 : index
    %c0_2 = arith.constant 0 : index
    %1 = vector.load %arg2[%c0_1, %c0_2] : memref<16x32xf32, #tpu.memory_space<vmem>>, vector<16x32xf32>
    %cst = arith.constant dense<0.000000e+00> : vector<8x32xf32>
    %2 = tpu.matmul %0, %1, %cst {dimension_numbers = #tpu.dot_dimension_numbers<[1], [0], [0], [1], [0, 0, 1, 1], [], []>} : vector<8x16xf32>, vector<16x32xf32>, vector<8x32xf32> -> vector<8x32xf32>
    %c0_3 = arith.constant 0 : index
    %c0_4 = arith.constant 0 : index
    %3 = vector.load %arg3[%c0_3, %c0_4] : memref<1x32xf32, #tpu.memory_space<vmem>>, vector<1x32xf32>
    %4 = vector.broadcast %3 : vector<1x32xf32> to vector<8x32xf32>
    %5 = arith.addf %2, %4 : vector<8x32xf32>
    %6 = arith.truncf %5 : vector<8x32xf32> to vector<8x32xbf16>
    %c0_5 = arith.constant 0 : index
    %c0_6 = arith.constant 0 : index
    %7 = vector.load %arg7[%c0_5, %c0_6] : memref<8x32xbf16, #tpu.memory_space<vmem>>, vector<8x32xbf16>
    tpu.vector_store %arg7[%c0_5, %c0_6], %6 {strides = array<i32>} : memref<8x32xbf16, #tpu.memory_space<vmem>>, vector<8x32xbf16>,
    %c0_7 = arith.constant 0 : index
    %c0_8 = arith.constant 0 : index
    %8 = vector.load %arg4[%c0_7, %c0_8] : memref<32x4xf32, #tpu.memory_space<vmem>>, vector<32x4xf32>
    %cst_9 = arith.constant dense<0.000000e+00> : vector<8x4xf32>
    %9 = tpu.matmul %5, %8, %cst_9 {dimension_numbers = #tpu.dot_dimension_numbers<[1], [0], [0], [1], [0, 0, 1, 1], [], []>} : vector<8x32xf32>, vector<32x4xf32>, vector<8x4xf32> -> vector<8x4xf32>
    %c0_10 = arith.constant 0 : index
    %c0_11 = arith.constant 0 : index
    %10 = vector.load %arg6[%c0_10, %c0_11] : memref<1x4xf32, #tpu.memory_space<vmem>>, vector<1x4xf32>
    %11 = vector.broadcast %10 : vector<1x4xf32> to vector<8x4xf32>
    %12 = arith.addf %9, %11 : vector<8x4xf32>
    %c0_12 = arith.constant 0 : index
    %c0_13 = arith.constant 0 : index
    %13 = vector.load %arg8[%c0_12, %c0_13] : memref<8x4xf32, #tpu.memory_space<vmem>>, vector<8x4xf32>
    tpu.vector_store %arg8[%c0_12, %c0_13], %12 {strides = array<i32>} : memref<8x4xf32, #tpu.memory_space<vmem>>, vector<8x4xf32>,
    %c0_14 = arith.constant 0 : index
    %c0_15 = arith.constant 0 : index
    %14 = vector.load %arg5[%c0_14, %c0_15] : memref<32x4xf32, #tpu.memory_space<vmem>>, vector<32x4xf32>
    %cst_16 = arith.constant dense<0.000000e+00> : vector<8x4xf32>
    %15 = tpu.matmul %5, %14, %cst_16 {dimension_numbers = #tpu.dot_dimension_numbers<[1], [0], [0], [1], [0, 0, 1, 1], [], []>} : vector<8x32xf32>, vector<32x4xf32>, vector<8x4xf32> -> vector<8x4xf32>
    %c0_17 = arith.constant 0 : index
    %c0_18 = arith.constant 0 : index
    %16 = vector.load %arg9[%c0_17, %c0_18] : memref<8x4xf32, #tpu.memory_space<vmem>>, vector<8x4xf32>
    tpu.vector_store %arg9[%c0_17, %c0_18], %15 {strides = array<i32>} : memref<8x4xf32, #tpu.memory_space<vmem>>, vector<8x4xf32>,
    return
  }
  func.func @transform_0(%arg0: i32) -> (i32, i32) {
    %c0_i32 = arith.constant 0 : i32
    %c0_i32_0 = arith.constant 0 : i32
    %c0_i32_1 = arith.constant 0 : i32
    return %c0_i32, %c0_i32_0 : i32, i32
  }
  func.func @transform_1(%arg0: i32) -> (i32, i32) {
    %c0_i32 = arith.constant 0 : i32
    %c0_i32_0 = arith.constant 0 : i32
    %c0_i32_1 = arith.constant 0 : i32
    return %c0_i32, %c0_i32_0 : i32, i32
  }
  func.func @transform_2(%arg0: i32) -> (i32, i32) {
    %c0_i32 = arith.constant 0 : i32
    %c0_i32_0 = arith.constant 0 : i32
    %c0_i32_1 = arith.constant 0 : i32
    return %c0_i32, %c0_i32_0 : i32, i32
  }
  func.func @transform_3(%arg0: i32) -> (i32, i32) {
    %c0_i32 = arith.constant 0 : i32
    %c0_i32_0 = arith.constant 0 : i32
    %c0_i32_1 = arith.constant 0 : i32
    return %c0_i32, %c0_i32_0 : i32, i32
  }
  func.func @transform_4(%arg0: i32) -> (i32, i32) {
    %c0_i32 = arith.constant 0 : i32
    %c0_i32_0 = arith.constant 0 : i32
    %c0_i32_1 = arith.constant 0 : i32
    return %c0_i32, %c0_i32_0 : i32, i32
  }
  func.func @transform_5(%arg0: i32) -> (i32, i32) {
    %c0_i32 = arith.constant 0 : i32
    %c0_i32_0 = arith.constant 0 : i32
    %c0_i32_1 = arith.constant 0 : i32
    return %c0_i32, %c0_i32_0 : i32, i32
  }
  func.func @transform_6(%arg0: i32) -> (i32, i32) {
    %c0_i32 = arith.constant 0 : i32
    %c0_i32_0 = arith.constant 0 : i32
    %c0_i32_1 = arith.constant 0 : i32
    return %c0_i32, %c0_i32_0 : i32, i32
  }
  func.func @transform_7(%arg0: i32) -> (i32, i32) {
    %c0_i32 = arith.constant 0 : i32
    %c0_i32_0 = arith.constant 0 : i32
    %c0_i32_1 = arith.constant 0 : i32
    return %c0_i32, %c0_i32_0 : i32, i32
  }
  func.func @transform_8(%arg0: i32) -> (i32, i32) {
    %c0_i32 = arith.constant 0 : i32
    %c0_i32_0 = arith.constant 0 : i32
    %c0_i32_1 = arith.constant 0 : i32
    return %c0_i32, %c0_i32_0 : i32, i32
  }
}

</mosaic_0001>

<llo_original>
// kernel: tpu_custom_call.1
$region0: #{tpu_custom_call.1}
  #allocation0 [shape = 'u32[]', space=smem, size = 0x4, offset = 0x4, fixed_abs, tag = 'smem constant byte address 0x4 - core index']
  #allocation1 [shape = 'u32[72,128]{1,0:T(1,128)}', space=vmem, size = 0x9000, scoped, tag = 'internal scratch']
  %s0 = inlined_call_operand.vmem [shape: f32[8,16], index: 0, kind: input, shape index: {}]
  %s1 = inlined_call_operand.vmem [shape: f32[16,32], index: 1, kind: input, shape index: {}]
  %s2 = inlined_call_operand.vmem [shape: f32[1,32], index: 2, kind: input, shape index: {}]
  %s3 = inlined_call_operand.vmem [shape: f32[32,4], index: 3, kind: input, shape index: {}]
  %s4 = inlined_call_operand.vmem [shape: f32[32,4], index: 4, kind: input, shape index: {}]
  %s5 = inlined_call_operand.vmem [shape: f32[1,4], index: 5, kind: input, shape index: {}]
  %s6 = inlined_call_operand.hbm [shape: bf16[8,32], index: 6, kind: output, shape index: {0}]
  %s7 = inlined_call_operand.vmem [shape: f32[8,4], index: 7, kind: output, shape index: {1}]
  %s8 = inlined_call_operand.vmem [shape: f32[8,4], index: 8, kind: output, shape index: {2}]
  %9 = xla_tuple %s6, %s7, %s8
  %s10 = sld [smem:[#allocation0]]
  $region50: #{tpu_custom_call.1} parent=0
    _
  %s12 = ssub.s32 1, %s10
  %s13 = scalar_select 0, %s12, %s10
  $region1: #{tpu_custom_call.1} parent=0
    #allocation2 [shape = 'u8[2048]{0}', space=vmem, size = 0x800, scoped, tag = 'output window, operand 0, single buffered']
    #allocation3 [shape = 's32[1]{0}', space=sflag, size = 0x4, scoped, tag = 'scoped memory for tpu_custom_call.1']
    %14 = vsyncpa [#allocation3], 0
    // Predicated region
    $region2: #{tpu_custom_call.1} parent=1 // pred_check
      _
    $region3: #{tpu_custom_call.1} parent=1 // pred_check_branch
      %16 = sbr.rel (0) target = $region5
    $region4: #{tpu_custom_call.1} parent=1 // pred_region
      _
    $region5: #{tpu_custom_call.1} parent=1 // pred_fallthru
      _
    // Predicated region
    $region6: #{tpu_custom_call.1} parent=1 // pred_check
      _
    $region7: #{tpu_custom_call.1} parent=1 // pred_check_branch
      %18 = sbr.rel (0) target = $region9
    $region8: #{tpu_custom_call.1} parent=1 // pred_region
      _
    $region9: #{tpu_custom_call.1} parent=1 // pred_fallthru
      _
    // Predicated region
    $region10: #{tpu_custom_call.1} parent=1 // pred_check
      _
    $region11: #{tpu_custom_call.1} parent=1 // pred_check_branch
      %20 = sbr.rel (0) target = $region13
    $region12: #{tpu_custom_call.1} parent=1 // pred_region
      _
    $region13: #{tpu_custom_call.1} parent=1 // pred_fallthru
      _
    // Predicated region
    $region14: #{tpu_custom_call.1} parent=1 // pred_check
      _
    $region15: #{tpu_custom_call.1} parent=1 // pred_check_branch
      %22 = sbr.rel (0) target = $region17
    $region16: #{tpu_custom_call.1} parent=1 // pred_region
      _
    $region17: #{tpu_custom_call.1} parent=1 // pred_fallthru
      _
    // Predicated region
    $region18: #{tpu_custom_call.1} parent=1 // pred_check
      _
    $region19: #{tpu_custom_call.1} parent=1 // pred_check_branch
      %24 = sbr.rel (0) target = $region21
    $region20: #{tpu_custom_call.1} parent=1 // pred_region
      _
    $region21: #{tpu_custom_call.1} parent=1 // pred_fallthru
      _
    // Predicated region
    $region22: #{tpu_custom_call.1} parent=1 // pred_check
      _
    $region23: #{tpu_custom_call.1} parent=1 // pred_check_branch
      %26 = sbr.rel (0) target = $region25
    $region24: #{tpu_custom_call.1} parent=1 // pred_region
      _
    $region25: #{tpu_custom_call.1} parent=1 // pred_fallthru
      _
    %v27 = vld [vmem:[%s0] sm:$0xff]
    %v28 = vld [vmem:[%s1] sm:$0xff]
    %v29 = vld [vmem:[%s1 + $0x8] sm:$0xff]
    %v30 = vld [vmem:[%s2] sm:$0x1]
    %v32 = vperm.slane %v30, 0
    %vm34 = vcmask 130048
    %v36 = vsel %vm34, %v27, 0
    %38 = vmatpush.msra.mxu0 0.0
    %39 = vmatpush.msra.mxu0 0.0
    %40 = vmatpush.msra.mxu0 0.0
    %41 = vmatpush.msra.mxu0 0.0
    %42 = vmatpush.msra.mxu0 0.0
    %43 = vmatpush.msra.mxu0 0.0
    %44 = vmatpush.msra.mxu0 0.0
    %45 = vmatpush.msra.mxu0 0.0
    %46 = vmatpush.msra.mxu0 0.0
    %47 = vmatpush.msra.mxu0 0.0
    %48 = vmatpush.msra.mxu0 0.0
    %49 = vmatpush.msra.mxu0 0.0
    %50 = vmatpush.msra.mxu0 0.0
    %51 = vmatpush.msra.mxu0 0.0
    %52 = vmatpush.msra.mxu0 %v29
    %53 = vmatpush.msra.mxu0 %v28
    %54 = vmatmul.f32.gmra.mxu0 %v36
    %v55 = vpop.f32.mrf.mxu0
    %v56 = vadd.f32 %v32, %v55
    %57 = vdwg.mxu0
    %v58 = vpack.c.bf16 %v56, %v56
    %vm59 = vcmask 257024
    %60 = vst.msk [vmem:[#allocation2] sm:$0xf] %vm59, %v58
    %v61 = vld [vmem:[%s3] sm:$0xff]
    %v62 = vld [vmem:[%s3 + $0x8] sm:$0xff]
    %v63 = vld [vmem:[%s3 + $0x10] sm:$0xff]
    %v64 = vld [vmem:[%s3 + $0x18] sm:$0xff]
    %v65 = vld [vmem:[%s5] sm:$0x1]
    %v67 = vperm.slane %v65, 0
    %vm69 = vcmask 261120
    %v71 = vsel %vm69, %v56, 0
    %73 = vmatpush.msra.mxu0 0.0
    %74 = vmatpush.msra.mxu0 0.0
    %75 = vmatpush.msra.mxu0 0.0
    %76 = vmatpush.msra.mxu0 0.0
    %77 = vmatpush.msra.mxu0 0.0
    %78 = vmatpush.msra.mxu0 0.0
    %79 = vmatpush.msra.mxu0 0.0
    %80 = vmatpush.msra.mxu0 0.0
    %81 = vmatpush.msra.mxu0 0.0
    %82 = vmatpush.msra.mxu0 0.0
    %83 = vmatpush.msra.mxu0 0.0
    %84 = vmatpush.msra.mxu0 0.0
    %85 = vmatpush.msra.mxu0 %v64
    %86 = vmatpush.msra.mxu0 %v63
    %87 = vmatpush.msra.mxu0 %v62
    %88 = vmatpush.msra.mxu0 %v61
    %89 = vmatmul.f32.gmra.mxu0 %v71
    %v90 = vpop.f32.mrf.mxu0
    %v91 = vadd.f32 %v67, %v90
    %92 = vdwg.mxu0
    %vm93 = vcmask 31744
    %94 = vst.msk [vmem:[%s7] sm:$0xff] %vm93, %v91
    %v95 = vld [vmem:[%s4] sm:$0xff]
    %v96 = vld [vmem:[%s4 + $0x8] sm:$0xff]
    %v97 = vld [vmem:[%s4 + $0x10] sm:$0xff]
    %v98 = vld [vmem:[%s4 + $0x18] sm:$0xff]
    %99 = vmatpush.msra.mxu0 0.0
    %100 = vmatpush.msra.mxu0 0.0
    %101 = vmatpush.msra.mxu0 0.0
    %102 = vmatpush.msra.mxu0 0.0
    %103 = vmatpush.msra.mxu0 0.0
    %104 = vmatpush.msra.mxu0 0.0
    %105 = vmatpush.msra.mxu0 0.0
    %106 = vmatpush.msra.mxu0 0.0
    %107 = vmatpush.msra.mxu0 0.0
    %108 = vmatpush.msra.mxu0 0.0
    %109 = vmatpush.msra.mxu0 0.0
    %110 = vmatpush.msra.mxu0 0.0
    %111 = vmatpush.msra.mxu0 %v98
    %112 = vmatpush.msra.mxu0 %v97
    %113 = vmatpush.msra.mxu0 %v96
    %114 = vmatpush.msra.mxu0 %v95
    %115 = vmatmul.f32.gmra.mxu0 %v71
    %v116 = vpop.f32.mrf.mxu0
    %v117 = vadd.f32 0.0, %v116
    %118 = vdwg.mxu0
    %119 = vst.msk [vmem:[%s8] sm:$0xff] %vm93, %v117
    // Predicated region
    $region26: #{tpu_custom_call.1} parent=1 // pred_check
      _
    $region27: #{tpu_custom_call.1} parent=1 // pred_check_branch
      %121 = sbr.rel (0) target = $region29
    $region28: #{tpu_custom_call.1} parent=1 // pred_region
      %123 = vsyncadd [#allocation3], 0
      %s125 = sshll.u32 [#allocation2], 4
      %s126 = int_to_ptr.vmem [resolvable:$true] %s125
      %s127 = sshll.u32 %s6, 4
      %s128 = int_to_ptr.hbm [resolvable:$true] %s127
      %130 = dma.vmem_to_hbm [thread:$0]  %s126, 64, %s128, [#allocation3]
    $region29: #{tpu_custom_call.1} parent=1 // pred_fallthru
      _
    // Predicated region
    $region30: #{tpu_custom_call.1} parent=1 // pred_check
      _
    $region31: #{tpu_custom_call.1} parent=1 // pred_check_branch
      %132 = sbr.rel (0) target = $region33
    $region32: #{tpu_custom_call.1} parent=1 // pred_region
      _
    $region33: #{tpu_custom_call.1} parent=1 // pred_fallthru
      _
    // Predicated region
    $region34: #{tpu_custom_call.1} parent=1 // pred_check
      _
    $region35: #{tpu_custom_call.1} parent=1 // pred_check_branch
      %134 = sbr.rel (0) target = $region37
    $region36: #{tpu_custom_call.1} parent=1 // pred_region
      _
    $region37: #{tpu_custom_call.1} parent=1 // pred_fallthru
      _
    // Predicated region
    $region38: #{tpu_custom_call.1} parent=1 // pred_check
      _
    $region39: #{tpu_custom_call.1} parent=1 // pred_check_branch
      %136 = sbr.rel (0) target = $region41
    $region40: #{tpu_custom_call.1} parent=1 // pred_region
      %138 = dma.done [#allocation3], 64
    $region41: #{tpu_custom_call.1} parent=1 // pred_fallthru
      _
    // Predicated region
    $region42: #{tpu_custom_call.1} parent=1 // pred_check
      _
    $region43: #{tpu_custom_call.1} parent=1 // pred_check_branch
      %140 = sbr.rel (0) target = $region45
    $region44: #{tpu_custom_call.1} parent=1 // pred_region
      _
    $region45: #{tpu_custom_call.1} parent=1 // pred_fallthru
      _
    // Predicated region
    $region46: #{tpu_custom_call.1} parent=1 // pred_check
      _
    $region47: #{tpu_custom_call.1} parent=1 // pred_check_branch
      %142 = sbr.rel (0) target = $region49
    $region48: #{tpu_custom_call.1} parent=1 // pred_region
      _
    $region49: #{tpu_custom_call.1} parent=1 // pred_fallthru
      _
    %143 = vsyncpa [#allocation3], 1

</llo_original>
